<compile_context>
chip_gen: v5e
topology: v5e:2x2
jax: 0.10.0
libtpu: 0.0.40
codegen_flags: <defaults>
</compile_context>

<pallas_src>
import jax
import jax.numpy as jnp
import numpy as np
from jax.experimental import pallas as pl
from jax.experimental.pallas import tpu as pltpu


def _round_up(x, m):
    return (x + m - 1) // m * m


def _vmem_capacity_bytes():
    """Generation-aware VMEM capacity (falls back to v7x's 64 MiB/TC)."""
    default = 64 * 1024 * 1024
    try:
        info = pltpu.get_tpu_info()
        cap = getattr(info, "vmem_capacity_bytes", None)
        if cap:
            return int(cap)
    except Exception:
        pass
    return default


def prepare_weights(w_stacked, n_pad, w_dtype):
    """Cast *then* pad (no padded f32 intermediate). Do once, outside hot loops."""
    _, N, _ = w_stacked.shape
    w = w_stacked.astype(w_dtype)
    if N != n_pad:
        w = jnp.pad(w, ((0, 0), (0, n_pad - N), (0, n_pad - N)))
    return w


# ----------------------------------------------------------------------------
# Kernels
# ----------------------------------------------------------------------------
def _mlp_resident_kernel(x_ref, w_ref, o_ref, stats_ref):
    """Grid step = one batch tile; layer loop unrolled in-kernel.

    x_ref:     (TILE_B, N_pad)    f32       input batch tile
    w_ref:     (L, N_pad, N_pad)  f32/bf16  full weight stack, VMEM-resident
    o_ref:     (TILE_B, N_pad)    f32       final activations
    stats_ref: (2*L, N_pad)       f32       rows 2l / 2l+1 = per-lane sum / sum_sq, layer l
    """
    num_layers = w_ref.shape[0]
    h = x_ref[...]
    for l in range(num_layers):            # static unroll: L is a compile-time constant
        # MXU matmul in the weight dtype (bf16 on all current gens), f32 accumulation.
        h = jnp.dot(h.astype(w_ref.dtype), w_ref[l],
                    preferred_element_type=jnp.float32)
        h = jnp.maximum(h, 0.0)            # ReLU (f32, VPU)
        # One-pass per-lane moment partials; padded rows/cols stay exactly zero.
        stats_ref[2 * l:2 * l + 1, :] = jnp.sum(h, axis=0, keepdims=True)
        stats_ref[2 * l + 1:2 * l + 2, :] = jnp.sum(h * h, axis=0, keepdims=True)
    o_ref[...] = h.astype(o_ref.dtype)


def _mlp_streamed_kernel(x_ref, w_ref, o_ref, stats_ref, acc_ref):
    """Grid step = (batch tile i, layer l); activation carried in acc_ref.

    x_ref:     (TILE_B, N_pad)  f32       input batch tile (consumed at l == 0)
    w_ref:     (N_pad, N_pad)   f32/bf16  this layer's transposed weight (streamed)
    o_ref:     (TILE_B, N_pad)  f32       final activations (stored at l == L-1)
    stats_ref: (2, N_pad)       f32       per-(tile, layer) [sum, sum_sq] lane partials
    acc_ref:   (TILE_B, N_pad)  VMEM scratch in the matmul dtype (bf16 when bf16 matmul)
    """
    l = pl.program_id(1)

    @pl.when(l == 0)
    def _():
        acc_ref[...] = x_ref[...].astype(acc_ref.dtype)

    h = jnp.dot(acc_ref[...], w_ref[...], preferred_element_type=jnp.float32)
    h = jnp.maximum(h, 0.0)
    acc_ref[...] = h.astype(acc_ref.dtype)

    stats_ref[0:1, :] = jnp.sum(h, axis=0, keepdims=True)
    stats_ref[1:2, :] = jnp.sum(h * h, axis=0, keepdims=True)

    @pl.when(l == pl.num_programs(1) - 1)
    def _():
        o_ref[...] = h.astype(o_ref.dtype)


# ----------------------------------------------------------------------------
# Wrapper
# ----------------------------------------------------------------------------
def mlp_forward(x, w_stacked, *, tile_b=None, use_bf16_matmul=True):
    """x: (B, N) f32; w_stacked: (L, N, N) with w_stacked[l] = W_l^T
    (or already padded/cast via prepare_weights).

    Returns (out, stds): out (B, N) f32 final activations, stds (L,) f32 unbiased
    per-layer std of the activations (matches torch.Tensor.std()).
    """
    B, N = x.shape
    L = w_stacked.shape[0]

    n_pad = _round_up(N, 128)                       # lane-dense feature dim
    w_dtype = jnp.bfloat16 if use_bf16_matmul else jnp.float32
    w_itemsize = jnp.dtype(w_dtype).itemsize

    if w_stacked.shape[1:] == (n_pad, n_pad) and w_stacked.dtype == w_dtype:
        w_p = w_stacked                             # caller already prepared weights
    else:
        w_p = prepare_weights(w_stacked, n_pad, w_dtype)

    vmem_cap = _vmem_capacity_bytes()
    weights_bytes = L * n_pad * n_pad * w_itemsize
    # VMEM-resident weights when the (possibly double-buffered) stack fits with room
    # for activation tiles; static layer unroll kept to modest depth.
    resident = (2 * weights_bytes <= vmem_cap // 2) and (L <= 64)

    # ---------------- batch tile size ----------------
    if tile_b is None:
        # resident mode: tile_b no longer affects the roofline, just amortises
        # grid-step overhead; streamed mode: big tiles raise arithmetic intensity.
        tile_b = 256 if resident else 512
    tile_b = max(8, _round_up(min(tile_b, _round_up(B, 8)), 8))

    def _need(tb):
        act = 2 * tb * n_pad * 4 + 2 * tb * n_pad * 4            # x + out, double-buffered
        if resident:
            return (2 * weights_bytes + act
                    + 2 * 2 * L * n_pad * 4                      # stats
                    + 2 * tb * n_pad * 4)                        # live activation headroom
        return (2 * n_pad * n_pad * w_itemsize + act             # weight double-buffer
                + 2 * 2 * n_pad * 4                              # stats
                + tb * n_pad * w_itemsize)                       # acc scratch (bf16)

    while tile_b > 8 and _need(tile_b) > 0.8 * vmem_cap:
        tile_b = _round_up(tile_b // 2, 8)
    need = _need(tile_b)
    assert need <= 0.9 * vmem_cap, (
        f"MLP kernel does not fit VMEM even at tile_b=8 "
        f"(need {need} B of {vmem_cap} B VMEM)")
    # TODO(synk): for n_pad large enough that a single (n_pad, n_pad) weight block
    # overflows VMEM (e.g. n_pad >= 4096 bf16 on v7x), add a third grid axis over
    # output features instead of asserting here.

    b_pad = _round_up(B, tile_b)
    num_tiles = b_pad // tile_b

    x_p = x.astype(jnp.float32)
    if (b_pad, n_pad) != (B, N):
        x_p = jnp.pad(x_p, ((0, b_pad - B), (0, n_pad - N)))

    vmem_limit = int(min(int(0.9 * vmem_cap), max(2 * need, 32 * 1024 * 1024)))
    vmem_limit = max(vmem_limit, need)

    flops = 2 * b_pad * n_pad * n_pad * L

    if resident:
        out_shape = (
            jax.ShapeDtypeStruct((b_pad, n_pad), jnp.float32),
            jax.ShapeDtypeStruct((num_tiles, 2 * L, n_pad), jnp.float32),
        )
        grid_spec = pltpu.PrefetchScalarGridSpec(
            num_scalar_prefetch=0,
            grid=(num_tiles,),
            in_specs=[
                pl.BlockSpec((tile_b, n_pad), lambda i: (i, 0)),
                # Constant index -> fetched once, stays VMEM-resident across tiles.
                pl.BlockSpec((L, n_pad, n_pad), lambda i: (0, 0, 0)),
            ],
            out_specs=(
                pl.BlockSpec((tile_b, n_pad), lambda i: (i, 0)),
                pl.BlockSpec((None, 2 * L, n_pad), lambda i: (i, 0, 0)),
            ),
        )
        kernel = _mlp_resident_kernel
        dim_sem = ("parallel",)
        bytes_accessed = (b_pad * n_pad * 4            # x
                          + weights_bytes              # weights read once
                          + b_pad * n_pad * 4          # out
                          + num_tiles * 2 * L * n_pad * 4)
    else:
        out_shape = (
            jax.ShapeDtypeStruct((b_pad, n_pad), jnp.float32),
            jax.ShapeDtypeStruct((num_tiles, L, 2, n_pad), jnp.float32),
        )
        grid_spec = pltpu.PrefetchScalarGridSpec(
            num_scalar_prefetch=0,
            grid=(num_tiles, L),
            in_specs=[
                pl.BlockSpec((tile_b, n_pad), lambda i, l: (i, 0)),
                pl.BlockSpec((None, n_pad, n_pad), lambda i, l: (l, 0, 0)),
            ],
            out_specs=(
                pl.BlockSpec((tile_b, n_pad), lambda i, l: (i, 0)),
                pl.BlockSpec((None, None, 2, n_pad), lambda i, l: (i, l, 0, 0)),
            ),
            scratch_shapes=[pltpu.VMEM((tile_b, n_pad), w_dtype)],
        )
        kernel = _mlp_streamed_kernel
        dim_sem = ("parallel", "arbitrary")
        bytes_accessed = (b_pad * n_pad * 4
                          + num_tiles * L * n_pad * n_pad * w_itemsize
                          + b_pad * n_pad * 4
                          + num_tiles * L * 2 * n_pad * 4)

    out_p, stats = pl.pallas_call(
        kernel,
        out_shape=out_shape,
        grid_spec=grid_spec,
        compiler_params=pltpu.CompilerParams(
            dimension_semantics=dim_sem,
            vmem_limit_bytes=vmem_limit,
        ),
        cost_estimate=pl.CostEstimate(
            flops=flops, transcendentals=0, bytes_accessed=int(bytes_accessed)),
    )(x_p, w_p)

    out = out_p[:B, :N]

    # Finish the per-layer unbiased std from the one-pass moments.  Padded rows
    # and columns are exactly zero, so only the true element count n = B*N matters.
    stats = stats.reshape(num_tiles, L, 2, n_pad)
    s1 = jnp.sum(stats[:, :, 0, :], axis=(0, 2))   # (L,)
    s2 = jnp.sum(stats[:, :, 1, :], axis=(0, 2))   # (L,)
    n = B * N
    # TODO(synk): one-pass (s2 - s1^2/n) variance can cancel / overflow in f32 for
    # pathologically exploding activations; torch's two-pass std may differ there.
    var = (s2 - s1 * s1 / n) / (n - 1)
    stds = jnp.sqrt(jnp.maximum(var, 0.0))         # maximum() propagates NaN blow-ups
    return out, stds


# ----------------------------------------------------------------------------
# Reference / init / demo
# ----------------------------------------------------------------------------
def mlp_reference(x, w_stacked, *, use_bf16_matmul=True):
    """Pure-JAX reference on the same precision path (sanity check)."""
    compute_dtype = jnp.bfloat16 if use_bf16_matmul else jnp.float32
    h = x.astype(jnp.float32)
    stds = []
    for l in range(w_stacked.shape[0]):
        w = w_stacked[l].astype(compute_dtype)
        h = jnp.dot(h.astype(compute_dtype), w, preferred_element_type=jnp.float32)
        h = jnp.maximum(h, 0.0)
        stds.append(jnp.std(h, ddof=1))
    return h, jnp.stack(stds)


def init_weights(key, neural_num, layers):
    """Kaiming-normal init (fan_in, gain=sqrt(2)), like nn.init.kaiming_normal_."""
    std = (2.0 / neural_num) ** 0.5
    keys = jax.random.split(key, layers)
    ws = []
    for k in keys:
        w = std * jax.random.normal(k, (neural_num, neural_num), dtype=jnp.float32)  # (out, in)
        ws.append(w.T)  # store W^T so the kernel computes x @ W^T as x @ w[l]
    return jnp.stack(ws, axis=0)  # (L, N, N)


if __name__ == "__main__":
    neural_num = 32
    layers = 4
    batch = 8

    key = jax.random.PRNGKey(0)
    k_x, k_w = jax.random.split(key)
    x = jax.random.normal(k_x, (batch, neural_num), dtype=jnp.float32)
    w_stacked = init_weights(k_w, neural_num, layers)

    out, stds = mlp_forward(x, w_stacked, use_bf16_matmul=True)
    out = jax.block_until_ready(out)
    stds = jax.block_until_ready(stds)

    # Sanity check against a same-precision pure-JAX reference.
    ref_out, ref_stds = mlp_reference(x, w_stacked, use_bf16_matmul=True)
    if not (np.allclose(np.asarray(out), np.asarray(ref_out), rtol=1e-2, atol=1e-2)
            and np.allclose(np.asarray(stds), np.asarray(ref_stds), rtol=1e-2, atol=1e-2)):
        raise AssertionError("Pallas MLP output does not match reference")

    # Mirror the module's per-layer std logging (host side).
    # TODO(synk): PyTorch's forward `break`s out of the layer loop when std is NaN;
    # the kernel always runs all layers, only the printing loop stops early here.
    for i in range(layers):
        print("layer:{}, std:{}".format(i, float(stds[i])))
        if bool(jnp.isnan(stds[i])):
            print("output is nan in {} layers".format(i))
            break

    print("KERNEL_OK")
</pallas_src>

<mosaic_0001>
module attributes {stable_mosaic.version = 11 : i64} {
  func.func @_mlp_resident_kernel(%arg0: i32, %arg1: memref<8x128xf32, #tpu.memory_space<vmem>>, %arg2: memref<4x128x128xbf16, #tpu.memory_space<vmem>>, %arg3: memref<8x128xf32, #tpu.memory_space<vmem>>, %arg4: memref<1x8x128xf32, #tpu.memory_space<vmem>>) attributes {dimension_semantics = [#tpu.dimension_semantics<parallel>], iteration_bounds = array<i64: 1>, scalar_prefetch = 0 : i64, scratch_operands = 0 : i64, tpu.core_type = #tpu.core_type<tc>, window_params = [{transform_indices = @transform_0, window_bounds = array<i64: 8, 128>}, {pipeline_mode = #tpu.pipeline_mode<synchronous>, transform_indices = @transform_1, window_bounds = array<i64: 4, 128, 128>}, {transform_indices = @transform_2, window_bounds = array<i64: 8, 128>}, {transform_indices = @transform_3, window_bounds = array<i64: 1, 8, 128>}]} {
    %c0 = arith.constant 0 : index
    %c0_0 = arith.constant 0 : index
    %0 = vector.load %arg1[%c0, %c0_0] : memref<8x128xf32, #tpu.memory_space<vmem>>, vector<8x128xf32>
    %1 = arith.truncf %0 : vector<8x128xf32> to vector<8x128xbf16>
    %c0_1 = arith.constant 0 : index
    %c0_2 = arith.constant 0 : index
    %c0_3 = arith.constant 0 : index
    %2 = vector.load %arg2[%c0_1, %c0_2, %c0_3] : memref<4x128x128xbf16, #tpu.memory_space<vmem>>, vector<1x128x128xbf16>
    %3 = vector.shape_cast %2 : vector<1x128x128xbf16> to vector<128x128xbf16>
    %cst = arith.constant dense<0.000000e+00> : vector<8x128xf32>
    %4 = tpu.matmul %1, %3, %cst {dimension_numbers = #tpu.dot_dimension_numbers<[1], [0], [0], [1], [0, 0, 1, 1], [], []>} : vector<8x128xbf16>, vector<128x128xbf16>, vector<8x128xf32> -> vector<8x128xf32>
    %cst_4 = arith.constant 0.000000e+00 : f32
    %5 = vector.broadcast %cst_4 : f32 to vector<8x128xf32>
    %6 = arith.maximumf %4, %5 : vector<8x128xf32>
    %cst_5 = arith.constant dense<0.000000e+00> : vector<128xf32>
    %7 = vector.multi_reduction <add>, %6, %cst_5 [0] : vector<8x128xf32> to vector<128xf32>
    %8 = vector.shape_cast %7 : vector<128xf32> to vector<1x128xf32>
    %c0_6 = arith.constant 0 : index
    %c0_7 = arith.constant 0 : index
    %c0_8 = arith.constant 0 : index
    %9 = vector.load %arg4[%c0_6, %c0_7, %c0_8] : memref<1x8x128xf32, #tpu.memory_space<vmem>>, vector<1x1x128xf32>
    %10 = vector.shape_cast %9 : vector<1x1x128xf32> to vector<1x128xf32>
    %11 = vector.shape_cast %8 : vector<1x128xf32> to vector<1x1x128xf32>
    tpu.vector_store %arg4[%c0_6, %c0_7, %c0_8], %11 {strides = array<i32>} : memref<1x8x128xf32, #tpu.memory_space<vmem>>, vector<1x1x128xf32>,
    %12 = arith.mulf %6, %6 : vector<8x128xf32>
    %cst_9 = arith.constant dense<0.000000e+00> : vector<128xf32>
    %13 = vector.multi_reduction <add>, %12, %cst_9 [0] : vector<8x128xf32> to vector<128xf32>
    %14 = vector.shape_cast %13 : vector<128xf32> to vector<1x128xf32>
    %c0_10 = arith.constant 0 : index
    %c1 = arith.constant 1 : index
    %c0_11 = arith.constant 0 : index
    %15 = vector.load %arg4[%c0_10, %c1, %c0_11] : memref<1x8x128xf32, #tpu.memory_space<vmem>>, vector<1x1x128xf32>
    %16 = vector.shape_cast %15 : vector<1x1x128xf32> to vector<1x128xf32>
    %17 = vector.shape_cast %14 : vector<1x128xf32> to vector<1x1x128xf32>
    tpu.vector_store %arg4[%c0_10, %c1, %c0_11], %17 {strides = array<i32>} : memref<1x8x128xf32, #tpu.memory_space<vmem>>, vector<1x1x128xf32>,
    %18 = arith.truncf %6 : vector<8x128xf32> to vector<8x128xbf16>
    %c1_12 = arith.constant 1 : index
    %c0_13 = arith.constant 0 : index
    %c0_14 = arith.constant 0 : index
    %19 = vector.load %arg2[%c1_12, %c0_13, %c0_14] : memref<4x128x128xbf16, #tpu.memory_space<vmem>>, vector<1x128x128xbf16>
    %20 = vector.shape_cast %19 : vector<1x128x128xbf16> to vector<128x128xbf16>
    %cst_15 = arith.constant dense<0.000000e+00> : vector<8x128xf32>
    %21 = tpu.matmul %18, %20, %cst_15 {dimension_numbers = #tpu.dot_dimension_numbers<[1], [0], [0], [1], [0, 0, 1, 1], [], []>} : vector<8x128xbf16>, vector<128x128xbf16>, vector<8x128xf32> -> vector<8x128xf32>
    %cst_16 = arith.constant 0.000000e+00 : f32
    %22 = vector.broadcast %cst_16 : f32 to vector<8x128xf32>
    %23 = arith.maximumf %21, %22 : vector<8x128xf32>
    %cst_17 = arith.constant dense<0.000000e+00> : vector<128xf32>
    %24 = vector.multi_reduction <add>, %23, %cst_17 [0] : vector<8x128xf32> to vector<128xf32>
    %25 = vector.shape_cast %24 : vector<128xf32> to vector<1x128xf32>
    %c0_18 = arith.constant 0 : index
    %c2 = arith.constant 2 : index
    %c0_19 = arith.constant 0 : index
    %26 = vector.load %arg4[%c0_18, %c2, %c0_19] : memref<1x8x128xf32, #tpu.memory_space<vmem>>, vector<1x1x128xf32>
    %27 = vector.shape_cast %26 : vector<1x1x128xf32> to vector<1x128xf32>
    %28 = vector.shape_cast %25 : vector<1x128xf32> to vector<1x1x128xf32>
    tpu.vector_store %arg4[%c0_18, %c2, %c0_19], %28 {strides = array<i32>} : memref<1x8x128xf32, #tpu.memory_space<vmem>>, vector<1x1x128xf32>,
    %29 = arith.mulf %23, %23 : vector<8x128xf32>
    %cst_20 = arith.constant dense<0.000000e+00> : vector<128xf32>
    %30 = vector.multi_reduction <add>, %29, %cst_20 [0] : vector<8x128xf32> to vector<128xf32>
    %31 = vector.shape_cast %30 : vector<128xf32> to vector<1x128xf32>
    %c0_21 = arith.constant 0 : index
    %c3 = arith.constant 3 : index
    %c0_22 = arith.constant 0 : index
    %32 = vector.load %arg4[%c0_21, %c3, %c0_22] : memref<1x8x128xf32, #tpu.memory_space<vmem>>, vector<1x1x128xf32>
    %33 = vector.shape_cast %32 : vector<1x1x128xf32> to vector<1x128xf32>
    %34 = vector.shape_cast %31 : vector<1x128xf32> to vector<1x1x128xf32>
    tpu.vector_store %arg4[%c0_21, %c3, %c0_22], %34 {strides = array<i32>} : memref<1x8x128xf32, #tpu.memory_space<vmem>>, vector<1x1x128xf32>,
    %35 = arith.truncf %23 : vector<8x128xf32> to vector<8x128xbf16>
    %c2_23 = arith.constant 2 : index
    %c0_24 = arith.constant 0 : index
    %c0_25 = arith.constant 0 : index
    %36 = vector.load %arg2[%c2_23, %c0_24, %c0_25] : memref<4x128x128xbf16, #tpu.memory_space<vmem>>, vector<1x128x128xbf16>
    %37 = vector.shape_cast %36 : vector<1x128x128xbf16> to vector<128x128xbf16>
    %cst_26 = arith.constant dense<0.000000e+00> : vector<8x128xf32>
    %38 = tpu.matmul %35, %37, %cst_26 {dimension_numbers = #tpu.dot_dimension_numbers<[1], [0], [0], [1], [0, 0, 1, 1], [], []>} : vector<8x128xbf16>, vector<128x128xbf16>, vector<8x128xf32> -> vector<8x128xf32>
    %cst_27 = arith.constant 0.000000e+00 : f32
    %39 = vector.broadcast %cst_27 : f32 to vector<8x128xf32>
    %40 = arith.maximumf %38, %39 : vector<8x128xf32>
    %cst_28 = arith.constant dense<0.000000e+00> : vector<128xf32>
    %41 = vector.multi_reduction <add>, %40, %cst_28 [0] : vector<8x128xf32> to vector<128xf32>
    %42 = vector.shape_cast %41 : vector<128xf32> to vector<1x128xf32>
    %c0_29 = arith.constant 0 : index
    %c4 = arith.constant 4 : index
    %c0_30 = arith.constant 0 : index
    %43 = vector.load %arg4[%c0_29, %c4, %c0_30] : memref<1x8x128xf32, #tpu.memory_space<vmem>>, vector<1x1x128xf32>
    %44 = vector.shape_cast %43 : vector<1x1x128xf32> to vector<1x128xf32>
    %45 = vector.shape_cast %42 : vector<1x128xf32> to vector<1x1x128xf32>
    tpu.vector_store %arg4[%c0_29, %c4, %c0_30], %45 {strides = array<i32>} : memref<1x8x128xf32, #tpu.memory_space<vmem>>, vector<1x1x128xf32>,
    %46 = arith.mulf %40, %40 : vector<8x128xf32>
    %cst_31 = arith.constant dense<0.000000e+00> : vector<128xf32>
    %47 = vector.multi_reduction <add>, %46, %cst_31 [0] : vector<8x128xf32> to vector<128xf32>
    %48 = vector.shape_cast %47 : vector<128xf32> to vector<1x128xf32>
    %c0_32 = arith.constant 0 : index
    %c5 = arith.constant 5 : index
    %c0_33 = arith.constant 0 : index
    %49 = vector.load %arg4[%c0_32, %c5, %c0_33] : memref<1x8x128xf32, #tpu.memory_space<vmem>>, vector<1x1x128xf32>
    %50 = vector.shape_cast %49 : vector<1x1x128xf32> to vector<1x128xf32>
    %51 = vector.shape_cast %48 : vector<1x128xf32> to vector<1x1x128xf32>
    tpu.vector_store %arg4[%c0_32, %c5, %c0_33], %51 {strides = array<i32>} : memref<1x8x128xf32, #tpu.memory_space<vmem>>, vector<1x1x128xf32>,
    %52 = arith.truncf %40 : vector<8x128xf32> to vector<8x128xbf16>
    %c3_34 = arith.constant 3 : index
    %c0_35 = arith.constant 0 : index
    %c0_36 = arith.constant 0 : index
    %53 = vector.load %arg2[%c3_34, %c0_35, %c0_36] : memref<4x128x128xbf16, #tpu.memory_space<vmem>>, vector<1x128x128xbf16>
    %54 = vector.shape_cast %53 : vector<1x128x128xbf16> to vector<128x128xbf16>
    %cst_37 = arith.constant dense<0.000000e+00> : vector<8x128xf32>
    %55 = tpu.matmul %52, %54, %cst_37 {dimension_numbers = #tpu.dot_dimension_numbers<[1], [0], [0], [1], [0, 0, 1, 1], [], []>} : vector<8x128xbf16>, vector<128x128xbf16>, vector<8x128xf32> -> vector<8x128xf32>
    %cst_38 = arith.constant 0.000000e+00 : f32
    %56 = vector.broadcast %cst_38 : f32 to vector<8x128xf32>
    %57 = arith.maximumf %55, %56 : vector<8x128xf32>
    %cst_39 = arith.constant dense<0.000000e+00> : vector<128xf32>
    %58 = vector.multi_reduction <add>, %57, %cst_39 [0] : vector<8x128xf32> to vector<128xf32>
    %59 = vector.shape_cast %58 : vector<128xf32> to vector<1x128xf32>
    %c0_40 = arith.constant 0 : index
    %c6 = arith.constant 6 : index
    %c0_41 = arith.constant 0 : index
    %60 = vector.load %arg4[%c0_40, %c6, %c0_41] : memref<1x8x128xf32, #tpu.memory_space<vmem>>, vector<1x1x128xf32>
    %61 = vector.shape_cast %60 : vector<1x1x128xf32> to vector<1x128xf32>
    %62 = vector.shape_cast %59 : vector<1x128xf32> to vector<1x1x128xf32>
    tpu.vector_store %arg4[%c0_40, %c6, %c0_41], %62 {strides = array<i32>} : memref<1x8x128xf32, #tpu.memory_space<vmem>>, vector<1x1x128xf32>,
    %63 = arith.mulf %57, %57 : vector<8x128xf32>
    %cst_42 = arith.constant dense<0.000000e+00> : vector<128xf32>
    %64 = vector.multi_reduction <add>, %63, %cst_42 [0] : vector<8x128xf32> to vector<128xf32>
    %65 = vector.shape_cast %64 : vector<128xf32> to vector<1x128xf32>
    %c0_43 = arith.constant 0 : index
    %c7 = arith.constant 7 : index
    %c0_44 = arith.constant 0 : index
    %66 = vector.load %arg4[%c0_43, %c7, %c0_44] : memref<1x8x128xf32, #tpu.memory_space<vmem>>, vector<1x1x128xf32>
    %67 = vector.shape_cast %66 : vector<1x1x128xf32> to vector<1x128xf32>
    %68 = vector.shape_cast %65 : vector<1x128xf32> to vector<1x1x128xf32>
    tpu.vector_store %arg4[%c0_43, %c7, %c0_44], %68 {strides = array<i32>} : memref<1x8x128xf32, #tpu.memory_space<vmem>>, vector<1x1x128xf32>,
    %c0_45 = arith.constant 0 : index
    %c0_46 = arith.constant 0 : index
    %69 = vector.load %arg3[%c0_45, %c0_46] : memref<8x128xf32, #tpu.memory_space<vmem>>, vector<8x128xf32>
    tpu.vector_store %arg3[%c0_45, %c0_46], %57 {strides = array<i32>} : memref<8x128xf32, #tpu.memory_space<vmem>>, vector<8x128xf32>,
    return
  }
  func.func @transform_0(%arg0: i32) -> (i32, i32) {
    %c0_i32 = arith.constant 0 : i32
    %c0_i32_0 = arith.constant 0 : i32
    return %arg0, %c0_i32 : i32, i32
  }
  func.func @transform_1(%arg0: i32) -> (i32, i32, i32) {
    %c0_i32 = arith.constant 0 : i32
    %c0_i32_0 = arith.constant 0 : i32
    %c0_i32_1 = arith.constant 0 : i32
    %c0_i32_2 = arith.constant 0 : i32
    return %c0_i32, %c0_i32_0, %c0_i32_1 : i32, i32, i32
  }
  func.func @transform_2(%arg0: i32) -> (i32, i32) {
    %c0_i32 = arith.constant 0 : i32
    %c0_i32_0 = arith.constant 0 : i32
    return %arg0, %c0_i32 : i32, i32
  }
  func.func @transform_3(%arg0: i32) -> (i32, i32, i32) {
    %c0_i32 = arith.constant 0 : i32
    %c0_i32_0 = arith.constant 0 : i32
    %c0_i32_1 = arith.constant 0 : i32
    return %arg0, %c0_i32, %c0_i32_0 : i32, i32, i32
  }
}

</mosaic_0001>

<llo_original>
// kernel: tpu_custom_call.1
$region0: #{tpu_custom_call.1}
  #allocation0 [shape = 'u32[]', space=smem, size = 0x4, offset = 0x4, fixed_abs, tag = 'smem constant byte address 0x4 - core index']
  #allocation1 [shape = 'u32[72,128]{1,0:T(1,128)}', space=vmem, size = 0x9000, scoped, tag = 'internal scratch']
  %s0 = inlined_call_operand.hbm [shape: f32[8,128], index: 0, kind: input, shape index: {}]
  %s1 = inlined_call_operand.hbm [shape: bf16[4,128,128], index: 1, kind: input, shape index: {}]
  %s2 = inlined_call_operand.hbm [shape: f32[8,128], index: 2, kind: output, shape index: {0}]
  %s3 = inlined_call_operand.hbm [shape: f32[1,8,128], index: 3, kind: output, shape index: {1}]
  %4 = xla_tuple %s2, %s3
  %s5 = sld [smem:[#allocation0]]
  $region34: #{tpu_custom_call.1} parent=0
    _
  %s7 = ssub.s32 1, %s5
  %s8 = scalar_select 0, %s7, %s5
  $region1: #{tpu_custom_call.1} parent=0
    #allocation2 [shape = 'u8[4096]{0}', space=vmem, size = 0x1000, scoped, tag = 'input window, operand 0, single buffered']
    #allocation3 [shape = 's32[1]{0}', space=sflag, size = 0x4, scoped, tag = 'scoped memory for tpu_custom_call.1']
    #allocation4 [shape = 's32[1]{0}', space=sflag, size = 0x4, scoped, tag = 'scoped memory for tpu_custom_call.1']
    #allocation5 [shape = 'u8[131072]{0}', space=vmem, size = 0x20000, scoped, tag = 'input window, operand 1, single buffered']
    #allocation6 [shape = 's32[1]{0}', space=sflag, size = 0x4, scoped, tag = 'scoped memory for tpu_custom_call.1']
    #allocation7 [shape = 'u8[4096]{0}', space=vmem, size = 0x1000, scoped, tag = 'output window, operand 0, single buffered']
    #allocation8 [shape = 'u8[4096]{0}', space=vmem, size = 0x1000, scoped, tag = 'output window, operand 1, single buffered']
    #allocation9 [shape = 's32[1]{0}', space=sflag, size = 0x4, scoped, tag = 'scoped memory for tpu_custom_call.1']
    %9 = vsyncpa [#allocation3], 0
    %10 = vsyncpa [#allocation6], 0
    %11 = vsyncpa [#allocation4], 0
    %12 = vsyncpa [#allocation9], 0
    // Predicated region
    $region2: #{tpu_custom_call.1} parent=1 // pred_check
      _
    $region3: #{tpu_custom_call.1} parent=1 // pred_check_branch
      %14 = sbr.rel (0) target = $region5
    $region4: #{tpu_custom_call.1} parent=1 // pred_region
      %16 = vsyncadd [#allocation3], 0
      %s18 = sshll.u32 %s0, 4
      %s19 = int_to_ptr.hbm [resolvable:$true] %s18
      %s20 = sshll.u32 [#allocation2], 4
      %s21 = int_to_ptr.vmem [resolvable:$true] %s20
      %23 = dma.hbm_to_vmem [thread:$0]  %s19, 128, %s21, [#allocation3]
    $region5: #{tpu_custom_call.1} parent=1 // pred_fallthru
      _
    // Predicated region
    $region6: #{tpu_custom_call.1} parent=1 // pred_check
      _
    $region7: #{tpu_custom_call.1} parent=1 // pred_check_branch
      %25 = sbr.rel (0) target = $region9
    $region8: #{tpu_custom_call.1} parent=1 // pred_region
      %27 = vsyncadd [#allocation6], 0
      %s28 = sshll.u32 %s1, 4
      %s29 = int_to_ptr.hbm [resolvable:$true] %s28
      %s30 = sshll.u32 [#allocation5], 4
      %s31 = int_to_ptr.vmem [resolvable:$true] %s30
      %36 = dma.hbm_to_vmem [thread:$0]  %s29, 4096, %s31, [#allocation6], 64, 64, 4
    $region9: #{tpu_custom_call.1} parent=1 // pred_fallthru
      _
    // Predicated region
    $region10: #{tpu_custom_call.1} parent=1 // pred_check
      _
    $region11: #{tpu_custom_call.1} parent=1 // pred_check_branch
      %38 = sbr.rel (0) target = $region13
    $region12: #{tpu_custom_call.1} parent=1 // pred_region
      %40 = dma.done [#allocation3], 128
    $region13: #{tpu_custom_call.1} parent=1 // pred_fallthru
      _
    // Predicated region
    $region14: #{tpu_custom_call.1} parent=1 // pred_check
      _
    $region15: #{tpu_custom_call.1} parent=1 // pred_check_branch
      %42 = sbr.rel (0) target = $region17
    $region16: #{tpu_custom_call.1} parent=1 // pred_region
      %44 = dma.done [#allocation6], 4096
    $region17: #{tpu_custom_call.1} parent=1 // pred_fallthru
      _
    %v45 = vld [vmem:[#allocation2] sm:$0xff]
    %v46 = vpack.c.bf16 %v45, %v45
    %v47 = vld [vmem:[#allocation5] sm:$0xf]
    %v48 = vld [vmem:[#allocation5 + $0x4] sm:$0xf]
    %v49 = vld [vmem:[#allocation5 + $0x8] sm:$0xf]
    %v50 = vld [vmem:[#allocation5 + $0xc] sm:$0xf]
    %v51 = vld [vmem:[#allocation5 + $0x10] sm:$0xf]
    %v52 = vld [vmem:[#allocation5 + $0x14] sm:$0xf]
    %v53 = vld [vmem:[#allocation5 + $0x18] sm:$0xf]
    %v54 = vld [vmem:[#allocation5 + $0x1c] sm:$0xf]
    %v55 = vld [vmem:[#allocation5 + $0x20] sm:$0xf]
    %v56 = vld [vmem:[#allocation5 + $0x24] sm:$0xf]
    %v57 = vld [vmem:[#allocation5 + $0x28] sm:$0xf]
    %v58 = vld [vmem:[#allocation5 + $0x2c] sm:$0xf]
    %v59 = vld [vmem:[#allocation5 + $0x30] sm:$0xf]
    %v60 = vld [vmem:[#allocation5 + $0x34] sm:$0xf]
    %v61 = vld [vmem:[#allocation5 + $0x38] sm:$0xf]
    %v62 = vld [vmem:[#allocation5 + $0x3c] sm:$0xf]
    %v79 = vunpack.c.l.b16 %v47
    %v80 = vunpack.c.l.b16 %v48
    %v81 = vunpack.c.l.b16 %v49
    %v82 = vunpack.c.l.b16 %v50
    %v83 = vunpack.c.l.b16 %v51
    %v84 = vunpack.c.l.b16 %v52
    %v85 = vunpack.c.l.b16 %v53
    %v86 = vunpack.c.l.b16 %v54
    %v87 = vunpack.c.l.b16 %v55
    %v88 = vunpack.c.l.b16 %v56
    %v89 = vunpack.c.l.b16 %v57
    %v90 = vunpack.c.l.b16 %v58
    %v91 = vunpack.c.l.b16 %v59
    %v92 = vunpack.c.l.b16 %v60
    %v93 = vunpack.c.l.b16 %v61
    %v94 = vunpack.c.l.b16 %v62
    %v95 = vpack.c.b16 %v80, %v79
    %v96 = vpack.c.b16 %v82, %v81
    %v97 = vpack.c.b16 %v84, %v83
    %v98 = vpack.c.b16 %v86, %v85
    %v99 = vpack.c.b16 %v88, %v87
    %v100 = vpack.c.b16 %v90, %v89
    %v101 = vpack.c.b16 %v92, %v91
    %v102 = vpack.c.b16 %v94, %v93
    %111 = vmatpush.bf16.msra.mxu0 %v102
    %112 = vmatpush.bf16.msra.mxu0 %v101
    %113 = vmatpush.bf16.msra.mxu0 %v100
    %114 = vmatpush.bf16.msra.mxu0 %v99
    %115 = vmatpush.bf16.msra.mxu0 %v98
    %116 = vmatpush.bf16.msra.mxu0 %v97
    %117 = vmatpush.bf16.msra.mxu0 %v96
    %118 = vmatpush.bf16.msra.mxu0 %v95
    %119 = vmatmul.bf16.gmra.mxu0 %v46
    %v120 = vpop.f32.mrf.mxu0
    %v121 = vadd.f32 0.0, %v120
    %v122 = vpop.f32.mrf.mxu0
    %123 = vdwg.mxu0
    %v124 = vmax.f32 %v121, 0.0
    %v125 = vrot.slane %v124, 4
    %v126 = vadd.f32 %v124, %v125
    %v127 = vrot.slane %v126, 2
    %v128 = vadd.f32 %v126, %v127
    %v129 = vrot.slane %v128, 1
    %v130 = vadd.f32 %v128, %v129
    %131 = vst [vmem:[#allocation8] sm:$0x1] %v130
    %v132 = vmul.f32 %v124, %v124
    %v133 = vrot.slane %v132, 4
    %v134 = vadd.f32 %v132, %v133
    %v135 = vrot.slane %v134, 2
    %v136 = vadd.f32 %v134, %v135
    %v137 = vrot.slane %v136, 1
    %v138 = vadd.f32 %v136, %v137
    %139 = vst [vmem:[#allocation8 + $0x1] sm:$0x1] %v138
    %v140 = vpack.c.bf16 %v124, %v124
    %s141 = scalar_lea.vmem [#allocation5], 64
    %v142 = vld [vmem:[%s141] sm:$0xf]
    %v143 = vld [vmem:[%s141 + $0x4] sm:$0xf]
    %v144 = vld [vmem:[%s141 + $0x8] sm:$0xf]
    %v145 = vld [vmem:[%s141 + $0xc] sm:$0xf]
    %v146 = vld [vmem:[%s141 + $0x10] sm:$0xf]
    %v147 = vld [vmem:[%s141 + $0x14] sm:$0xf]
    %v148 = vld [vmem:[%s141 + $0x18] sm:$0xf]
    %v149 = vld [vmem:[%s141 + $0x1c] sm:$0xf]
    %v150 = vld [vmem:[%s141 + $0x20] sm:$0xf]
    %v151 = vld [vmem:[%s141 + $0x24] sm:$0xf]
    %v152 = vld [vmem:[%s141 + $0x28] sm:$0xf]
    %v153 = vld [vmem:[%s141 + $0x2c] sm:$0xf]
    %v154 = vld [vmem:[%s141 + $0x30] sm:$0xf]
    %v155 = vld [vmem:[%s141 + $0x34] sm:$0xf]
    %v156 = vld [vmem:[%s141 + $0x38] sm:$0xf]
    %v157 = vld [vmem:[%s141 + $0x3c] sm:$0xf]
    %v174 = vunpack.c.l.b16 %v142
    %v175 = vunpack.c.l.b16 %v143
    %v176 = vunpack.c.l.b16 %v144
    %v177 = vunpack.c.l.b16 %v145
    %v178 = vunpack.c.l.b16 %v146
    %v179 = vunpack.c.l.b16 %v147
    %v180 = vunpack.c.l.b16 %v148
    %v181 = vunpack.c.l.b16 %v149
    %v182 = vunpack.c.l.b16 %v150
    %v183 = vunpack.c.l.b16 %v151
    %v184 = vunpack.c.l.b16 %v152
    %v185 = vunpack.c.l.b16 %v153
    %v186 = vunpack.c.l.b16 %v154
    %v187 = vunpack.c.l.b16 %v155
    %v188 = vunpack.c.l.b16 %v156
    %v189 = vunpack.c.l.b16 %v157
    %v190 = vpack.c.b16 %v175, %v174
    %v191 = vpack.c.b16 %v177, %v176
    %v192 = vpack.c.b16 %v179, %v178
    %v193 = vpack.c.b16 %v181, %v180
    %v194 = vpack.c.b16 %v183, %v182
    %v195 = vpack.c.b16 %v185, %v184
    %v196 = vpack.c.b16 %v187, %v186
    %v197 = vpack.c.b16 %v189, %v188
    %206 = vmatpush.bf16.msra.mxu0 %v197
    %207 = vmatpush.bf16.msra.mxu0 %v196
    %208 = vmatpush.bf16.msra.mxu0 %v195
    %209 = vmatpush.bf16.msra.mxu0 %v194
    %210 = vmatpush.bf16.msra.mxu0 %v193
    %211 = vmatpush.bf16.msra.mxu0 %v192
    %212 = vmatpush.bf16.msra.mxu0 %v191
    %213 = vmatpush.bf16.msra.mxu0 %v190
    %214 = vmatmul.bf16.gmra.mxu0 %v140
    %v215 = vpop.f32.mrf.mxu0
    %v216 = vadd.f32 0.0, %v215
    %v217 = vpop.f32.mrf.mxu0
    %218 = vdwg.mxu0
    %v219 = vmax.f32 %v216, 0.0
    %v220 = vrot.slane %v219, 4
    %v221 = vadd.f32 %v219, %v220
    %v222 = vrot.slane %v221, 2
    %v223 = vadd.f32 %v221, %v222
    %v224 = vrot.slane %v223, 1
    %v225 = vadd.f32 %v223, %v224
    %226 = vst [vmem:[#allocation8 + $0x2] sm:$0x1] %v225
    %v227 = vmul.f32 %v219, %v219
    %v228 = vrot.slane %v227, 4
    %v229 = vadd.f32 %v227, %v228
    %v230 = vrot.slane %v229, 2
    %v231 = vadd.f32 %v229, %v230
    %v232 = vrot.slane %v231, 1
    %v233 = vadd.f32 %v231, %v232
    %234 = vst [vmem:[#allocation8 + $0x3] sm:$0x1] %v233
    %v235 = vpack.c.bf16 %v219, %v219
    %s236 = scalar_lea.vmem [#allocation5], 128
    %v237 = vld [vmem:[%s236] sm:$0xf]
    %v238 = vld [vmem:[%s236 + $0x4] sm:$0xf]
    %v239 = vld [vmem:[%s236 + $0x8] sm:$0xf]
    %v240 = vld [vmem:[%s236 + $0xc] sm:$0xf]
    %v241 = vld [vmem:[%s236 + $0x10] sm:$0xf]
    %v242 = vld [vmem:[%s236 + $0x14] sm:$0xf]
    %v243 = vld [vmem:[%s236 + $0x18] sm:$0xf]
    %v244 = vld [vmem:[%s236 + $0x1c] sm:$0xf]
    %v245 = vld [vmem:[%s236 + $0x20] sm:$0xf]
    %v246 = vld [vmem:[%s236 + $0x24] sm:$0xf]
    %v247 = vld [vmem:[%s236 + $0x28] sm:$0xf]
    %v248 = vld [vmem:[%s236 + $0x2c] sm:$0xf]
    %v249 = vld [vmem:[%s236 + $0x30] sm:$0xf]
    %v250 = vld [vmem:[%s236 + $0x34] sm:$0xf]
    %v251 = vld [vmem:[%s236 + $0x38] sm:$0xf]
    %v252 = vld [vmem:[%s236 + $0x3c] sm:$0xf]
    %v269 = vunpack.c.l.b16 %v237
    %v270 = vunpack.c.l.b16 %v238
    %v271 = vunpack.c.l.b16 %v239
    %v272 = vunpack.c.l.b16 %v240
    %v273 = vunpack.c.l.b16 %v241
    %v274 = vunpack.c.l.b16 %v242
    %v275 = vunpack.c.l.b16 %v243
    %v276 = vunpack.c.l.b16 %v244
    %v277 = vunpack.c.l.b16 %v245
    %v278 = vunpack.c.l.b16 %v246
    %v279 = vunpack.c.l.b16 %v247
    %v280 = vunpack.c.l.b16 %v248
    %v281 = vunpack.c.l.b16 %v249
    %v282 = vunpack.c.l.b16 %v250
    %v283 = vunpack.c.l.b16 %v251
    %v284 = vunpack.c.l.b16 %v252
    %v285 = vpack.c.b16 %v270, %v269
    %v286 = vpack.c.b16 %v272, %v271
    %v287 = vpack.c.b16 %v274, %v273
    %v288 = vpack.c.b16 %v276, %v275
    %v289 = vpack.c.b16 %v278, %v277
    %v290 = vpack.c.b16 %v280, %v279
    %v291 = vpack.c.b16 %v282, %v281
    %v292 = vpack.c.b16 %v284, %v283
    %301 = vmatpush.bf16.msra.mxu0 %v292
    %302 = vmatpush.bf16.msra.mxu0 %v291
    %303 = vmatpush.bf16.msra.mxu0 %v290
    %304 = vmatpush.bf16.msra.mxu0 %v289
    %305 = vmatpush.bf16.msra.mxu0 %v288
    %306 = vmatpush.bf16.msra.mxu0 %v287
    %307 = vmatpush.bf16.msra.mxu0 %v286
    %308 = vmatpush.bf16.msra.mxu0 %v285
    %309 = vmatmul.bf16.gmra.mxu0 %v235
    %v310 = vpop.f32.mrf.mxu0
    %v311 = vadd.f32 0.0, %v310
    %v312 = vpop.f32.mrf.mxu0
    %313 = vdwg.mxu0
    %v314 = vmax.f32 %v311, 0.0
    %v315 = vrot.slane %v314, 4
    %v316 = vadd.f32 %v314, %v315
    %v317 = vrot.slane %v316, 2
    %v318 = vadd.f32 %v316, %v317
    %v319 = vrot.slane %v318, 1
    %v320 = vadd.f32 %v318, %v319
    %321 = vst [vmem:[#allocation8 + $0x4] sm:$0x1] %v320
    %v322 = vmul.f32 %v314, %v314
    %v323 = vrot.slane %v322, 4
    %v324 = vadd.f32 %v322, %v323
    %v325 = vrot.slane %v324, 2
    %v326 = vadd.f32 %v324, %v325
    %v327 = vrot.slane %v326, 1
    %v328 = vadd.f32 %v326, %v327
    %329 = vst [vmem:[#allocation8 + $0x5] sm:$0x1] %v328
    %v330 = vpack.c.bf16 %v314, %v314
    %s331 = scalar_lea.vmem [#allocation5], 192
    %v332 = vld [vmem:[%s331] sm:$0xf]
    %v333 = vld [vmem:[%s331 + $0x4] sm:$0xf]
    %v334 = vld [vmem:[%s331 + $0x8] sm:$0xf]
    %v335 = vld [vmem:[%s331 + $0xc] sm:$0xf]
    %v336 = vld [vmem:[%s331 + $0x10] sm:$0xf]
    %v337 = vld [vmem:[%s331 + $0x14] sm:$0xf]
    %v338 = vld [vmem:[%s331 + $0x18] sm:$0xf]
    %v339 = vld [vmem:[%s331 + $0x1c] sm:$0xf]
    %v340 = vld [vmem:[%s331 + $0x20] sm:$0xf]
    %v341 = vld [vmem:[%s331 + $0x24] sm:$0xf]
    %v342 = vld [vmem:[%s331 + $0x28] sm:$0xf]
    %v343 = vld [vmem:[%s331 + $0x2c] sm:$0xf]
    %v344 = vld [vmem:[%s331 + $0x30] sm:$0xf]
    %v345 = vld [vmem:[%s331 + $0x34] sm:$0xf]
    %v346 = vld [vmem:[%s331 + $0x38] sm:$0xf]
    %v347 = vld [vmem:[%s331 + $0x3c] sm:$0xf]
    %v364 = vunpack.c.l.b16 %v332
    %v365 = vunpack.c.l.b16 %v333
    %v366 = vunpack.c.l.b16 %v334
    %v367 = vunpack.c.l.b16 %v335
    %v368 = vunpack.c.l.b16 %v336
    %v369 = vunpack.c.l.b16 %v337
    %v370 = vunpack.c.l.b16 %v338
    %v371 = vunpack.c.l.b16 %v339
    %v372 = vunpack.c.l.b16 %v340
    %v373 = vunpack.c.l.b16 %v341
    %v374 = vunpack.c.l.b16 %v342
    %v375 = vunpack.c.l.b16 %v343
    %v376 = vunpack.c.l.b16 %v344
    %v377 = vunpack.c.l.b16 %v345
    %v378 = vunpack.c.l.b16 %v346
    %v379 = vunpack.c.l.b16 %v347
    %v380 = vpack.c.b16 %v365, %v364
    %v381 = vpack.c.b16 %v367, %v366
    %v382 = vpack.c.b16 %v369, %v368
    %v383 = vpack.c.b16 %v371, %v370
    %v384 = vpack.c.b16 %v373, %v372
    %v385 = vpack.c.b16 %v375, %v374
    %v386 = vpack.c.b16 %v377, %v376
    %v387 = vpack.c.b16 %v379, %v378
    %396 = vmatpush.bf16.msra.mxu0 %v387
    %397 = vmatpush.bf16.msra.mxu0 %v386
    %398 = vmatpush.bf16.msra.mxu0 %v385
    %399 = vmatpush.bf16.msra.mxu0 %v384
    %400 = vmatpush.bf16.msra.mxu0 %v383
    %401 = vmatpush.bf16.msra.mxu0 %v382
    %402 = vmatpush.bf16.msra.mxu0 %v381
    %403 = vmatpush.bf16.msra.mxu0 %v380
    %404 = vmatmul.bf16.gmra.mxu0 %v330
    %v405 = vpop.f32.mrf.mxu0
    %v406 = vadd.f32 0.0, %v405
    %v407 = vpop.f32.mrf.mxu0
    %408 = vdwg.mxu0
    %v409 = vmax.f32 %v406, 0.0
    %v410 = vrot.slane %v409, 4
    %v411 = vadd.f32 %v409, %v410
    %v412 = vrot.slane %v411, 2
    %v413 = vadd.f32 %v411, %v412
    %v414 = vrot.slane %v413, 1
    %v415 = vadd.f32 %v413, %v414
    %416 = vst [vmem:[#allocation8 + $0x6] sm:$0x1] %v415
    %v417 = vmul.f32 %v409, %v409
    %v418 = vrot.slane %v417, 4
    %v419 = vadd.f32 %v417, %v418
    %v420 = vrot.slane %v419, 2
    %v421 = vadd.f32 %v419, %v420
    %v422 = vrot.slane %v421, 1
    %v423 = vadd.f32 %v421, %v422
    %424 = vst [vmem:[#allocation8 + $0x7] sm:$0x1] %v423
    %425 = vst [vmem:[#allocation7] sm:$0xff] %v409
    // Predicated region
    $region18: #{tpu_custom_call.1} parent=1 // pred_check
      _
    $region19: #{tpu_custom_call.1} parent=1 // pred_check_branch
      %427 = sbr.rel (0) target = $region21
    $region20: #{tpu_custom_call.1} parent=1 // pred_region
      %429 = vsyncadd [#allocation4], 0
      %s431 = sshll.u32 [#allocation7], 4
      %s432 = int_to_ptr.vmem [resolvable:$true] %s431
      %s433 = sshll.u32 %s2, 4
      %s434 = int_to_ptr.hbm [resolvable:$true] %s433
      %436 = dma.vmem_to_hbm [thread:$0]  %s432, 128, %s434, [#allocation4]
    $region21: #{tpu_custom_call.1} parent=1 // pred_fallthru
      _
    // Predicated region
    $region22: #{tpu_custom_call.1} parent=1 // pred_check
      _
    $region23: #{tpu_custom_call.1} parent=1 // pred_check_branch
      %438 = sbr.rel (0) target = $region25
    $region24: #{tpu_custom_call.1} parent=1 // pred_region
      %440 = vsyncadd [#allocation9], 0
      %s442 = sshll.u32 [#allocation8], 4
      %s443 = int_to_ptr.vmem [resolvable:$true] %s442
      %s444 = sshll.u32 %s3, 4
      %s445 = int_to_ptr.hbm [resolvable:$true] %s444
      %447 = dma.vmem_to_hbm [thread:$0]  %s443, 128, %s445, [#allocation9]
    $region25: #{tpu_custom_call.1} parent=1 // pred_fallthru
      _
    // Predicated region
    $region26: #{tpu_custom_call.1} parent=1 // pred_check
      _
    $region27: #{tpu_custom_call.1} parent=1 // pred_check_branch
      %449 = sbr.rel (0) target = $region29
    $region28: #{tpu_custom_call.1} parent=1 // pred_region
      %451 = dma.done [#allocation4], 128
    $region29: #{tpu_custom_call.1} parent=1 // pred_fallthru
      _
    // Predicated region
    $region30: #{tpu_custom_call.1} parent=1 // pred_check
      _
    $region31: #{tpu_custom_call.1} parent=1 // pred_check_branch
      %453 = sbr.rel (0) target = $region33
    $region32: #{tpu_custom_call.1} parent=1 // pred_region
      %455 = dma.done [#allocation9], 128
    $region33: #{tpu_custom_call.1} parent=1 // pred_fallthru
      _
    %456 = vsyncpa [#allocation3], 1
    %457 = vsyncpa [#allocation6], 1
    %458 = vsyncpa [#allocation4], 1
    %459 = vsyncpa [#allocation9], 1

</llo_original>
